<compile_context>
chip_gen: v7x
topology: tpu7x:2x2x1
jax: 0.10.0
libtpu: 0.0.40
codegen_flags: <defaults>
</compile_context>

<pallas_src>
from functools import partial
import math

import numpy as np
import jax
import jax.numpy as jnp
from jax import lax
from jax.experimental import pallas as pl
from jax.experimental.pallas import tpu as pltpu

_NORM_EPS = 1e-12                 # F.normalize eps
_CLAMP_LOG = math.log(1e-8)       # log of score.clamp_min(1e-8)
_NEG_BIG = -1e30                  # additive mask for padded softmax columns
_LANE = 128


# ----------------------------- in-kernel helpers -----------------------------

def _row_normalize(x):
    # F.normalize(x, dim=1): x / max(||x||, 1e-12)  (rsqrt rides the EUP slot)
    sq = jnp.sum(x * x, axis=1, keepdims=True)
    return x * lax.rsqrt(jnp.maximum(sq, _NORM_EPS * _NORM_EPS))


def _matmul_nt(a, b):
    # a (M, K) @ b.T with b (N, K) -> (M, N), f32 MXU accumulation
    return lax.dot_general(a, b, (((1,), (1,)), ((), ())),
                           preferred_element_type=jnp.float32)


def _choose_tile(n, target=512):
    if n <= target:
        return n
    t = (min(target, n) // _LANE) * _LANE
    while t >= _LANE:
        if n % t == 0:
            return t
        t -= _LANE
    return n


def _params(vmem_bytes):
    # explicit scoped-VMEM budget (perf review): floor at 32 MiB, cap at v7x physical 64 MiB
    return pltpu.CompilerParams(
        dimension_semantics=("arbitrary",),
        vmem_limit_bytes=int(min(max(vmem_bytes, 32 << 20), 64 << 20)))


# ------------------------------ Kernel A -------------------------------------
# sim = normalize(inputs) @ features.T tiled over N, plus online softmax stats of
# sim/temp and the per-camera "nearest_intra" row maxima (instance column excluded).

def _sim_stats_kernel(inv_temp, tile_n, cam_vals,
                      x_ref, feat_ref, cam_ref, idx_ref,
                      sim_ref, m_ref, l_ref, near_ref, xn_sc):
    i = pl.program_id(0)

    @pl.when(i == 0)
    def _():
        m_ref[...] = jnp.full_like(m_ref, -jnp.inf)
        l_ref[...] = jnp.zeros_like(l_ref)
        near_ref[...] = jnp.full_like(near_ref, -jnp.inf)
        xn_sc[...] = _row_normalize(x_ref[...]).astype(jnp.bfloat16)   # hoisted once

    sim = _matmul_nt(xn_sc[...], feat_ref[...])            # (B, T) f32 (bf16 MXU operands)
    sim_ref[...] = sim

    # online softmax stats of sim / temp
    z = sim * inv_temp
    m_old = m_ref[...]
    m_new = jnp.maximum(m_old, jnp.max(z, axis=1, keepdims=True))
    l_ref[...] = (l_ref[...] * jnp.exp(m_old - m_new)
                  + jnp.sum(jnp.exp(z - m_new), axis=1, keepdims=True))
    m_ref[...] = m_new

    # per-camera nearest_intra accumulation: max over n of (sim if gated else -1)
    B, T = sim.shape
    lane = lax.broadcasted_iota(jnp.int32, (B, T), 1) + i * tile_n
    not_inst = lane != idx_ref[...]
    cols = []
    for cv in cam_vals:
        gate = jnp.logical_and(cam_ref[...] == cv, not_inst)
        cols.append(jnp.max(jnp.where(gate, sim, -1.0), axis=1, keepdims=True))
    near_ref[...] = jnp.maximum(near_ref[...], jnp.concatenate(cols, axis=1))


def sim_and_stats(inputs, features_bf16, cam2d, idx2d, cam_vals, temp, tile_n):
    B, D = inputs.shape
    N = features_bf16.shape[0]
    C = len(cam_vals)
    est = (2 * (B * D * 4 + tile_n * D * 2 + tile_n * 4 + B * 4 + B * tile_n * 4
                + 2 * B * 4 + B * C * 4)
           + B * D * 2 + 8 * B * tile_n * 4)
    return pl.pallas_call(
        partial(_sim_stats_kernel, float(1.0 / temp), tile_n, cam_vals),
        out_shape=(jax.ShapeDtypeStruct((B, N), jnp.float32),
                   jax.ShapeDtypeStruct((B, 1), jnp.float32),
                   jax.ShapeDtypeStruct((B, 1), jnp.float32),
                   jax.ShapeDtypeStruct((B, C), jnp.float32)),
        grid_spec=pltpu.PrefetchScalarGridSpec(
            num_scalar_prefetch=0, grid=(N // tile_n,),
            in_specs=[pl.BlockSpec((B, D), lambda i: (0, 0)),
                      pl.BlockSpec((tile_n, D), lambda i: (i, 0)),
                      pl.BlockSpec((1, tile_n), lambda i: (0, i)),
                      pl.BlockSpec((B, 1), lambda i: (0, 0))],
            out_specs=[pl.BlockSpec((B, tile_n), lambda i: (0, i)),
                       pl.BlockSpec((B, 1), lambda i: (0, 0)),
                       pl.BlockSpec((B, 1), lambda i: (0, 0)),
                       pl.BlockSpec((B, C), lambda i: (0, 0))],
            scratch_shapes=[pltpu.VMEM((B, D), jnp.bfloat16)]),
        compiler_params=_params(est),
    )(inputs, features_bf16, cam2d, idx2d)


# ------------------------------ Kernel B -------------------------------------
# sw_full = cat_c softmax(features @ normalize(cam_mem[c]).T) with lane-aligned
# (128-padded) camera segments; ONE matmul per N-tile against the concatenated centers
# held once in a VMEM scratch; also accumulates per-column sum of squares.

def _camwise_kernel(seg_slices, feat_ref, cen_hbm, logmask_ref,
                    sw_ref, colsq_ref, cen_vmem, sem):
    @pl.when(pl.program_id(0) == 0)
    def _():
        cp = pltpu.make_async_copy(cen_hbm, cen_vmem, sem)   # constant operand: DMA once
        cp.start()
        cp.wait()
        colsq_ref[...] = jnp.zeros_like(colsq_ref)

    # padded columns get an additive -1e30 so their softmax weight is exactly 0
    logits = _matmul_nt(feat_ref[...], cen_vmem[...]) + logmask_ref[...]   # (T, Kp) f32

    for (s, e) in seg_slices:              # static, lane-aligned camera segments
        seg = logits[:, s:e]
        m = jnp.max(seg, axis=1, keepdims=True)
        ex = jnp.exp(seg - m)
        d = jnp.sum(ex, axis=1, keepdims=True)
        sw = ex / d
        sw_ref[:, s:e] = sw.astype(sw_ref.dtype)
        colsq_ref[:, s:e] += jnp.sum(sw * sw, axis=0, keepdims=True)


def camwise_softmax_fused(features_bf16, centers_bf16, logmask, seg_slices, tile_n):
    N, D = features_bf16.shape
    Kp = centers_bf16.shape[0]
    seg_max = max(e - s for (s, e) in seg_slices)
    est = (2 * (tile_n * D * 2 + Kp * 4 + tile_n * Kp * 2 + Kp * 4)
           + Kp * D * 2 + tile_n * Kp * 4 + 6 * tile_n * seg_max * 4)
    return pl.pallas_call(
        partial(_camwise_kernel, tuple(seg_slices)),
        out_shape=(jax.ShapeDtypeStruct((N, Kp), jnp.bfloat16),
                   jax.ShapeDtypeStruct((1, Kp), jnp.float32)),
        grid_spec=pltpu.PrefetchScalarGridSpec(
            num_scalar_prefetch=0, grid=(N // tile_n,),
            in_specs=[pl.BlockSpec((tile_n, D), lambda i: (i, 0)),
                      pl.BlockSpec(memory_space=pl.ANY),       # centers, not double-buffered
                      pl.BlockSpec((1, Kp), lambda i: (0, 0))],
            out_specs=[pl.BlockSpec((tile_n, Kp), lambda i: (i, 0)),
                       pl.BlockSpec((1, Kp), lambda i: (0, 0))],
            scratch_shapes=[pltpu.VMEM((Kp, D), jnp.bfloat16),
                            pltpu.SemaphoreType.DMA]),
        compiler_params=_params(est),
    )(features_bf16, centers_bf16, logmask)


# ------------------------------ Kernel C -------------------------------------
# sim_wise = normalize(sw_full[indexes], dim=1) @ normalize(sw_full.T, dim=1), tiled over N.
# Column norms come from colsq and are folded into the small (B,Kp) operand (bf16 MXU).
# Also accumulates the per-camera sw_max row maxima needed by the loss kernel.

def _wise_sim_kernel(tile_n, cam_vals,
                     swb_ref, colsq_ref, swf_ref, cam_ref, idx_ref,
                     out_ref, swmax_ref, swb_sc):
    i = pl.program_id(0)

    @pl.when(i == 0)
    def _():
        swmax_ref[...] = jnp.full_like(swmax_ref, -jnp.inf)
        swb_n = _row_normalize(swb_ref[...].astype(jnp.float32))          # (B, Kp)
        inv_col = lax.rsqrt(jnp.maximum(colsq_ref[...], _NORM_EPS * _NORM_EPS))
        swb_sc[...] = (swb_n * inv_col).astype(jnp.bfloat16)              # hoisted once

    sw = _matmul_nt(swb_sc[...], swf_ref[...])                            # (B, T) f32
    out_ref[...] = sw

    B, T = sw.shape
    lane = lax.broadcasted_iota(jnp.int32, (B, T), 1) + i * tile_n
    not_inst = lane != idx_ref[...]
    cols = []
    for cv in cam_vals:
        gate = jnp.logical_and(cam_ref[...] == cv, not_inst)
        cols.append(jnp.max(jnp.where(gate, sw, -1.0), axis=1, keepdims=True))
    swmax_ref[...] = jnp.maximum(swmax_ref[...], jnp.concatenate(cols, axis=1))


def wise_sim_tiled(swb, sw_full, colsq, cam2d, idx2d, cam_vals, tile_n):
    B, Kp = swb.shape
    N = sw_full.shape[0]
    C = len(cam_vals)
    est = (2 * (B * Kp * 2 + Kp * 4 + tile_n * Kp * 2 + tile_n * 4 + B * 4
                + B * tile_n * 4 + B * C * 4)
           + B * Kp * 2 + 6 * B * tile_n * 4)
    return pl.pallas_call(
        partial(_wise_sim_kernel, tile_n, cam_vals),
        out_shape=(jax.ShapeDtypeStruct((B, N), jnp.float32),
                   jax.ShapeDtypeStruct((B, C), jnp.float32)),
        grid_spec=pltpu.PrefetchScalarGridSpec(
            num_scalar_prefetch=0, grid=(N // tile_n,),
            in_specs=[pl.BlockSpec((B, Kp), lambda i: (0, 0)),
                      pl.BlockSpec((1, Kp), lambda i: (0, 0)),
                      pl.BlockSpec((tile_n, Kp), lambda i: (i, 0)),
                      pl.BlockSpec((1, tile_n), lambda i: (0, i)),
                      pl.BlockSpec((B, 1), lambda i: (0, 0))],
            out_specs=[pl.BlockSpec((B, tile_n), lambda i: (0, i)),
                       pl.BlockSpec((B, C), lambda i: (0, 0))],
            scratch_shapes=[pltpu.VMEM((B, Kp), jnp.bfloat16)]),
        compiler_params=_params(est),
    )(swb, colsq, sw_full, cam2d, idx2d)


# ------------------------------ Kernel D -------------------------------------
# Streamed loss: grid over N tiles; per-camera count/loss accumulated into (B, C)
# scratch using the precomputed per-camera maxima; instance loss accumulated alongside;
# batch-softmax weighting, /num_cams and /B applied at the last tile.

def _loss_kernel(inv_temp, eps, tile_n, cam_vals, inv_b,
                 sim_ref, simw_ref, cam_ref, idx_ref, m_ref, l_ref, near_ref, swmax_ref,
                 ins_ref, intra_ref, cnt_sc, loss_sc):
    i = pl.program_id(0)

    @pl.when(i == 0)
    def _():
        cnt_sc[...] = jnp.zeros_like(cnt_sc)
        loss_sc[...] = jnp.zeros_like(loss_sc)
        ins_ref[...] = jnp.zeros_like(ins_ref)
        intra_ref[...] = jnp.zeros_like(intra_ref)

    sim = sim_ref[...]
    sw = simw_ref[...]
    # -log(clamp(softmax(sim/temp), 1e-8)) == -max(z - m - log l, log 1e-8)
    neg_log = -jnp.maximum(sim * inv_temp - m_ref[...] - jnp.log(l_ref[...]), _CLAMP_LOG)

    B, T = sim.shape
    lane = lax.broadcasted_iota(jnp.int32, (B, T), 1) + i * tile_n
    is_inst = lane == idx_ref[...]
    not_inst = jnp.logical_not(is_inst)

    # instance loss accumulation (exactly one hit per batch row across all tiles)
    inst_term = jnp.sum(jnp.where(is_inst, neg_log, 0.0), axis=1, keepdims=True)
    ins_ref[...] += jnp.sum(inst_term, axis=0, keepdims=True)

    near = near_ref[...]
    swmax = swmax_ref[...]
    cnt_cols, loss_cols = [], []
    for ci, cv in enumerate(cam_vals):
        gate = jnp.logical_and(cam_ref[...] == cv, not_inst)
        sim_i = jnp.where(gate, sim, -1.0)
        sw_i = jnp.where(gate, sw, -1.0)
        both = jnp.logical_and(sim_i > near[:, ci:ci + 1] * eps,
                               sw_i > swmax[:, ci:ci + 1] * eps).astype(jnp.float32)
        cnt_cols.append(jnp.sum(both, axis=1, keepdims=True))
        loss_cols.append(jnp.sum(neg_log * both, axis=1, keepdims=True))
    cnt_sc[...] += jnp.concatenate(cnt_cols, axis=1)
    loss_sc[...] += jnp.concatenate(loss_cols, axis=1)

    @pl.when(i == pl.num_programs(0) - 1)
    def _():
        count = cnt_sc[...] + 1e-8
        e = jnp.exp(count - jnp.max(count, axis=0, keepdims=True))   # softmax over batch
        den = jnp.sum(e, axis=0, keepdims=True)
        per_cam = jnp.sum(loss_sc[...] / count * e, axis=0, keepdims=True) / den  # (1, C)
        intra_ref[...] = jnp.sum(per_cam, axis=1, keepdims=True) * (1.0 / len(cam_vals))
        ins_ref[...] = ins_ref[...] * inv_b


def fused_losses(sim, sim_wise, cam2d, idx2d, m, l, nearest, swmax, cam_vals,
                 temp, eps, tile_n):
    B, N = sim.shape
    C = len(cam_vals)
    est = (2 * (2 * B * tile_n * 4 + tile_n * 4 + 3 * B * 4 + 2 * B * C * 4)
           + 2 * B * C * 4 + 8 * B * tile_n * 4)
    ins, intra = pl.pallas_call(
        partial(_loss_kernel, float(1.0 / temp), float(eps), tile_n, cam_vals,
                float(1.0 / B)),
        out_shape=(jax.ShapeDtypeStruct((1, 1), jnp.float32),
                   jax.ShapeDtypeStruct((1, 1), jnp.float32)),
        grid_spec=pltpu.PrefetchScalarGridSpec(
            num_scalar_prefetch=0, grid=(N // tile_n,),
            in_specs=[pl.BlockSpec((B, tile_n), lambda i: (0, i)),
                      pl.BlockSpec((B, tile_n), lambda i: (0, i)),
                      pl.BlockSpec((1, tile_n), lambda i: (0, i)),
                      pl.BlockSpec((B, 1), lambda i: (0, 0)),
                      pl.BlockSpec((B, 1), lambda i: (0, 0)),
                      pl.BlockSpec((B, 1), lambda i: (0, 0)),
                      pl.BlockSpec((B, C), lambda i: (0, 0)),
                      pl.BlockSpec((B, C), lambda i: (0, 0))],
            out_specs=[pl.BlockSpec((1, 1), lambda i: (0, 0)),
                       pl.BlockSpec((1, 1), lambda i: (0, 0))],
            scratch_shapes=[pltpu.VMEM((B, C), jnp.float32),
                            pltpu.VMEM((B, C), jnp.float32)]),
        compiler_params=_params(est),
    )(sim, sim_wise, cam2d, idx2d, m, l, nearest, swmax)
    return ins[0, 0], intra[0, 0]


# ------------------------------- forward (glue) ------------------------------

def memory_wise_forward(inputs, indexes, features, cam, cam_mem, allcam,
                        temp=0.05, neighbor_eps=0.9, tile_n=512):
    """Reproduces Memory_wise_v2_ori.forward with stage3=False, refine=False."""
    B, D = inputs.shape
    N = features.shape[0]
    tile_n = _choose_tile(N, tile_n)
    cam_vals = tuple(int(c) for c in allcam)

    # bf16 copy of the memory bank for the MXU (halves HBM traffic of the (N, D) streams).
    features_bf16 = features.astype(jnp.bfloat16)

    # host-side prep: per-camera centers, L2-normalized, padded to 128-lane segments so
    # the in-kernel per-segment softmax uses static lane-aligned slices; padded rows are
    # zero vectors masked out with an additive -1e30 log-mask.
    seg_slices, cen_blocks, logmask_blocks = [], [], []
    off = 0
    for c in allcam:
        cen = np.asarray(cam_mem[c], dtype=np.float32)
        cen = cen / np.maximum(np.linalg.norm(cen, axis=1, keepdims=True), _NORM_EPS)
        kc = cen.shape[0]
        kp = max(_LANE, ((kc + _LANE - 1) // _LANE) * _LANE)
        cen_blocks.append(np.concatenate(
            [cen, np.zeros((kp - kc, cen.shape[1]), np.float32)], axis=0))
        lm = np.zeros((kp,), np.float32)
        lm[kc:] = _NEG_BIG
        logmask_blocks.append(lm)
        seg_slices.append((off, off + kp))
        off += kp
    centers_bf16 = jnp.asarray(np.concatenate(cen_blocks, axis=0), dtype=jnp.bfloat16)
    logmask = jnp.asarray(np.concatenate(logmask_blocks)[None, :], dtype=jnp.float32)

    cam2d = cam.astype(jnp.int32).reshape(1, N)
    idx2d = indexes.astype(jnp.int32).reshape(B, 1)

    # 1) sim + online softmax stats + per-camera nearest_intra (single bank pass)
    sim, m, l, nearest = sim_and_stats(inputs, features_bf16, cam2d, idx2d,
                                       cam_vals, temp, tile_n)

    # 2) fused camwise softmax slab (N, Kp) bf16 + column sum-of-squares (single pass)
    sw_full, colsq = camwise_softmax_fused(features_bf16, centers_bf16, logmask,
                                           seg_slices, tile_n)

    # 3) row gather (tiny, host glue) + tiled wise-similarity + per-camera sw_max
    swb = jnp.take(sw_full, indexes, axis=0)                          # (B, Kp) bf16
    sim_wise, swmax = wise_sim_tiled(swb, sw_full, colsq, cam2d, idx2d,
                                     cam_vals, tile_n)

    # 4) streamed per-camera intrawise loss + instance loss
    inswise, intrawise = fused_losses(sim, sim_wise, cam2d, idx2d, m, l,
                                      nearest, swmax, cam_vals,
                                      temp, neighbor_eps, tile_n)
    return inswise, intrawise


# ------------------------ deterministic setup (host glue) --------------------

def build_cam_mem(features_np, labels_np, cam_np, allcam):
    """Equivalent of cam_mem_gen()/generate_cluster_features (host-side, numpy)."""
    cam_mem = {}
    for c in allcam:
        centers = {}
        for i in range(labels_np.shape[0]):
            lab = int(labels_np[i])
            if lab == -1 or int(cam_np[i]) != int(c):
                continue
            centers.setdefault(lab, []).append(features_np[i])
        mats = [np.stack(centers[k], axis=0).mean(axis=0) for k in sorted(centers.keys())]
        cam_mem[c] = jnp.asarray(np.stack(mats, axis=0), dtype=jnp.float32)
    return cam_mem


if __name__ == "__main__":
    # small shapes consistent with the module's forward (N chosen to exercise tiling)
    B, D, N = 8, 32, 1024         # batch, num_features, num_samples
    num_cluster, num_cams = 8, 2
    temp, neighbor_eps = 0.05, 0.9

    key = jax.random.PRNGKey(0)
    k_in, k_feat, k_lab, k_cam, k_idx = jax.random.split(key, 5)

    inputs = jax.random.normal(k_in, (B, D), dtype=jnp.float32)
    feats = jax.random.normal(k_feat, (N, D), dtype=jnp.float32)
    features = feats / jnp.linalg.norm(feats, axis=1, keepdims=True)   # memory bank
    labels = jax.random.randint(k_lab, (N,), 0, num_cluster, dtype=jnp.int32)
    cam = jax.random.randint(k_cam, (N,), 0, num_cams, dtype=jnp.int32)
    indexes = jax.random.permutation(k_idx, N)[:B].astype(jnp.int32)

    features_np = np.asarray(features)
    labels_np = np.asarray(labels)
    cam_np = np.asarray(cam)
    allcam = sorted(np.unique(cam_np).tolist())          # cam2uid() / allcam
    cam_mem = build_cam_mem(features_np, labels_np, cam_np, allcam)

    # TODO(synk): the EMA memory-bank update done in EM.backward / updateEM is a
    # training-time in-place side effect and is not part of this forward kernel.

    inswise, intrawise = memory_wise_forward(
        inputs, indexes, features, cam, cam_mem, allcam,
        temp=temp, neighbor_eps=neighbor_eps)
    (inswise, intrawise) = jax.block_until_ready((inswise, intrawise))

    assert np.isfinite(float(inswise)) and np.isfinite(float(intrawise))
    print("KERNEL_OK")
</pallas_src>

<mosaic_0001>
module attributes {stable_mosaic.version = 11 : i64} {
  func.func @_sim_stats_kernel(%arg0: i32, %arg1: memref<8x32xf32, #tpu.memory_space<vmem>>, %arg2: memref<512x32xbf16, #tpu.memory_space<vmem>>, %arg3: memref<1x512xi32, #tpu.memory_space<vmem>>, %arg4: memref<8x1xi32, #tpu.memory_space<vmem>>, %arg5: memref<8x512xf32, #tpu.memory_space<vmem>>, %arg6: memref<8x1xf32, #tpu.memory_space<vmem>>, %arg7: memref<8x1xf32, #tpu.memory_space<vmem>>, %arg8: memref<8x2xf32, #tpu.memory_space<vmem>>, %arg9: memref<8x32xbf16, #tpu.memory_space<vmem>>) attributes {dimension_semantics = [#tpu.dimension_semantics<arbitrary>], iteration_bounds = array<i64: 2>, scalar_prefetch = 0 : i64, scratch_operands = 1 : i64, tpu.core_type = #tpu.core_type<tc>, window_params = [{pipeline_mode = #tpu.pipeline_mode<synchronous>, transform_indices = @transform_0, window_bounds = array<i64: 8, 32>}, {transform_indices = @transform_1, window_bounds = array<i64: 512, 32>}, {transform_indices = @transform_2, window_bounds = array<i64: 1, 512>}, {pipeline_mode = #tpu.pipeline_mode<synchronous>, transform_indices = @transform_3, window_bounds = array<i64: 8, 1>}, {transform_indices = @transform_4, window_bounds = array<i64: 8, 512>}, {pipeline_mode = #tpu.pipeline_mode<synchronous>, transform_indices = @transform_5, window_bounds = array<i64: 8, 1>}, {pipeline_mode = #tpu.pipeline_mode<synchronous>, transform_indices = @transform_6, window_bounds = array<i64: 8, 1>}, {pipeline_mode = #tpu.pipeline_mode<synchronous>, transform_indices = @transform_7, window_bounds = array<i64: 8, 2>}]} {
    %c0_i32 = arith.constant 0 : i32
    %0 = arith.cmpi eq, %arg0, %c0_i32 : i32
    %1 = arith.extui %0 : i1 to i32
    %c0_i32_0 = arith.constant 0 : i32
    %2 = arith.cmpi ne, %1, %c0_i32_0 : i32
    scf.if %2 {
      %cst_32 = arith.constant 0xFF800000 : f32
      %54 = vector.broadcast %cst_32 : f32 to vector<8x1xf32>
      %c0_33 = arith.constant 0 : index
      %c0_34 = arith.constant 0 : index
      %55 = vector.load %arg6[%c0_33, %c0_34] : memref<8x1xf32, #tpu.memory_space<vmem>>, vector<8x1xf32>
      tpu.vector_store %arg6[%c0_33, %c0_34], %54 {strides = array<i32>} : memref<8x1xf32, #tpu.memory_space<vmem>>, vector<8x1xf32>,
      %cst_35 = arith.constant 0.000000e+00 : f32
      %56 = vector.broadcast %cst_35 : f32 to vector<8x1xf32>
      %c0_36 = arith.constant 0 : index
      %c0_37 = arith.constant 0 : index
      %57 = vector.load %arg7[%c0_36, %c0_37] : memref<8x1xf32, #tpu.memory_space<vmem>>, vector<8x1xf32>
      tpu.vector_store %arg7[%c0_36, %c0_37], %56 {strides = array<i32>} : memref<8x1xf32, #tpu.memory_space<vmem>>, vector<8x1xf32>,
      %cst_38 = arith.constant 0xFF800000 : f32
      %58 = vector.broadcast %cst_38 : f32 to vector<8x2xf32>
      %c0_39 = arith.constant 0 : index
      %c0_40 = arith.constant 0 : index
      %59 = vector.load %arg8[%c0_39, %c0_40] : memref<8x2xf32, #tpu.memory_space<vmem>>, vector<8x2xf32>
      tpu.vector_store %arg8[%c0_39, %c0_40], %58 {strides = array<i32>} : memref<8x2xf32, #tpu.memory_space<vmem>>, vector<8x2xf32>,
      %c0_41 = arith.constant 0 : index
      %c0_42 = arith.constant 0 : index
      %60 = vector.load %arg1[%c0_41, %c0_42] : memref<8x32xf32, #tpu.memory_space<vmem>>, vector<8x32xf32>
      %61 = arith.mulf %60, %60 : vector<8x32xf32>
      %cst_43 = arith.constant dense<0.000000e+00> : vector<8xf32>
      %62 = vector.multi_reduction <add>, %61, %cst_43 [1] : vector<8x32xf32> to vector<8xf32>
      %63 = vector.shape_cast %62 : vector<8xf32> to vector<8x1xf32>
      %cst_44 = arith.constant 1.000000e-24 : f32
      %64 = vector.broadcast %cst_44 : f32 to vector<8x1xf32>
      %65 = arith.maximumf %63, %64 : vector<8x1xf32>
      %66 = math.rsqrt %65 : vector<8x1xf32>
      %67 = vector.broadcast %66 : vector<8x1xf32> to vector<8x32xf32>
      %68 = arith.mulf %60, %67 : vector<8x32xf32>
      %69 = arith.truncf %68 : vector<8x32xf32> to vector<8x32xbf16>
      %c0_45 = arith.constant 0 : index
      %c0_46 = arith.constant 0 : index
      %70 = vector.load %arg9[%c0_45, %c0_46] : memref<8x32xbf16, #tpu.memory_space<vmem>>, vector<8x32xbf16>
      tpu.vector_store %arg9[%c0_45, %c0_46], %69 {strides = array<i32>} : memref<8x32xbf16, #tpu.memory_space<vmem>>, vector<8x32xbf16>,
    } else {
    }
    %c0 = arith.constant 0 : index
    %c0_1 = arith.constant 0 : index
    %3 = vector.load %arg9[%c0, %c0_1] : memref<8x32xbf16, #tpu.memory_space<vmem>>, vector<8x32xbf16>
    %c0_2 = arith.constant 0 : index
    %c0_3 = arith.constant 0 : index
    %4 = vector.load %arg2[%c0_2, %c0_3] : memref<512x32xbf16, #tpu.memory_space<vmem>>, vector<512x32xbf16>
    %cst = arith.constant dense<0.000000e+00> : vector<8x512xf32>
    %5 = tpu.matmul %3, %4, %cst {dimension_numbers = #tpu.dot_dimension_numbers<[1], [1], [0], [0], [0, 0, 1, 0], [], []>} : vector<8x32xbf16>, vector<512x32xbf16>, vector<8x512xf32> -> vector<8x512xf32>
    %c0_4 = arith.constant 0 : index
    %c0_5 = arith.constant 0 : index
    %6 = vector.load %arg5[%c0_4, %c0_5] : memref<8x512xf32, #tpu.memory_space<vmem>>, vector<8x512xf32>
    tpu.vector_store %arg5[%c0_4, %c0_5], %5 {strides = array<i32>} : memref<8x512xf32, #tpu.memory_space<vmem>>, vector<8x512xf32>,
    %cst_6 = arith.constant 2.000000e+01 : f32
    %7 = vector.broadcast %cst_6 : f32 to vector<8x512xf32>
    %8 = arith.mulf %5, %7 : vector<8x512xf32>
    %c0_7 = arith.constant 0 : index
    %c0_8 = arith.constant 0 : index
    %9 = vector.load %arg6[%c0_7, %c0_8] : memref<8x1xf32, #tpu.memory_space<vmem>>, vector<8x1xf32>
    %cst_9 = arith.constant dense<0xFF800000> : vector<8xf32>
    %10 = vector.multi_reduction <maximumf>, %8, %cst_9 [1] : vector<8x512xf32> to vector<8xf32>
    %11 = vector.shape_cast %10 : vector<8xf32> to vector<8x1xf32>
    %12 = arith.maximumf %9, %11 : vector<8x1xf32>
    %c0_10 = arith.constant 0 : index
    %c0_11 = arith.constant 0 : index
    %13 = vector.load %arg7[%c0_10, %c0_11] : memref<8x1xf32, #tpu.memory_space<vmem>>, vector<8x1xf32>
    %14 = arith.subf %9, %12 : vector<8x1xf32>
    %15 = math.exp %14 : vector<8x1xf32>
    %16 = arith.mulf %13, %15 : vector<8x1xf32>
    %17 = vector.broadcast %12 : vector<8x1xf32> to vector<8x512xf32>
    %18 = arith.subf %8, %17 : vector<8x512xf32>
    %19 = math.exp %18 : vector<8x512xf32>
    %cst_12 = arith.constant dense<0.000000e+00> : vector<8xf32>
    %20 = vector.multi_reduction <add>, %19, %cst_12 [1] : vector<8x512xf32> to vector<8xf32>
    %21 = vector.shape_cast %20 : vector<8xf32> to vector<8x1xf32>
    %22 = arith.addf %16, %21 : vector<8x1xf32>
    %c0_13 = arith.constant 0 : index
    %c0_14 = arith.constant 0 : index
    %23 = vector.load %arg7[%c0_13, %c0_14] : memref<8x1xf32, #tpu.memory_space<vmem>>, vector<8x1xf32>
    tpu.vector_store %arg7[%c0_13, %c0_14], %22 {strides = array<i32>} : memref<8x1xf32, #tpu.memory_space<vmem>>, vector<8x1xf32>,
    %c0_15 = arith.constant 0 : index
    %c0_16 = arith.constant 0 : index
    %24 = vector.load %arg6[%c0_15, %c0_16] : memref<8x1xf32, #tpu.memory_space<vmem>>, vector<8x1xf32>
    tpu.vector_store %arg6[%c0_15, %c0_16], %12 {strides = array<i32>} : memref<8x1xf32, #tpu.memory_space<vmem>>, vector<8x1xf32>,
    %25 = tpu.iota {dimensions = array<i32: 1>} : vector<8x512xi32>
    %c512_i32 = arith.constant 512 : i32
    %26 = arith.muli %arg0, %c512_i32 : i32
    %27 = vector.broadcast %26 : i32 to vector<8x512xi32>
    %28 = arith.addi %25, %27 : vector<8x512xi32>
    %c0_17 = arith.constant 0 : index
    %c0_18 = arith.constant 0 : index
    %29 = vector.load %arg4[%c0_17, %c0_18] : memref<8x1xi32, #tpu.memory_space<vmem>>, vector<8x1xi32>
    %30 = vector.broadcast %29 : vector<8x1xi32> to vector<8x512xi32>
    %31 = arith.cmpi ne, %28, %30 : vector<8x512xi32>
    %c0_19 = arith.constant 0 : index
    %c0_20 = arith.constant 0 : index
    %32 = vector.load %arg3[%c0_19, %c0_20] : memref<1x512xi32, #tpu.memory_space<vmem>>, vector<1x512xi32>
    %c0_i32_21 = arith.constant 0 : i32
    %33 = vector.broadcast %c0_i32_21 : i32 to vector<1x512xi32>
    %34 = arith.cmpi eq, %32, %33 : vector<1x512xi32>
    %35 = vector.broadcast %34 : vector<1x512xi1> to vector<8x512xi1>
    %36 = arith.andi %35, %31 : vector<8x512xi1>
    %cst_22 = arith.constant -1.000000e+00 : f32
    %37 = vector.broadcast %cst_22 : f32 to vector<8x512xf32>
    %38 = arith.select %36, %5, %37 : vector<8x512xi1>, vector<8x512xf32>
    %cst_23 = arith.constant dense<0xFF800000> : vector<8xf32>
    %39 = vector.multi_reduction <maximumf>, %38, %cst_23 [1] : vector<8x512xf32> to vector<8xf32>
    %40 = vector.shape_cast %39 : vector<8xf32> to vector<8x1xf32>
    %c0_24 = arith.constant 0 : index
    %c0_25 = arith.constant 0 : index
    %41 = vector.load %arg3[%c0_24, %c0_25] : memref<1x512xi32, #tpu.memory_space<vmem>>, vector<1x512xi32>
    %c1_i32 = arith.constant 1 : i32
    %42 = vector.broadcast %c1_i32 : i32 to vector<1x512xi32>
    %43 = arith.cmpi eq, %41, %42 : vector<1x512xi32>
    %44 = vector.broadcast %43 : vector<1x512xi1> to vector<8x512xi1>
    %45 = arith.andi %44, %31 : vector<8x512xi1>
    %cst_26 = arith.constant -1.000000e+00 : f32
    %46 = vector.broadcast %cst_26 : f32 to vector<8x512xf32>
    %47 = arith.select %45, %5, %46 : vector<8x512xi1>, vector<8x512xf32>
    %cst_27 = arith.constant dense<0xFF800000> : vector<8xf32>
    %48 = vector.multi_reduction <maximumf>, %47, %cst_27 [1] : vector<8x512xf32> to vector<8xf32>
    %49 = vector.shape_cast %48 : vector<8xf32> to vector<8x1xf32>
    %c0_28 = arith.constant 0 : index
    %c0_29 = arith.constant 0 : index
    %50 = vector.load %arg8[%c0_28, %c0_29] : memref<8x2xf32, #tpu.memory_space<vmem>>, vector<8x2xf32>
    %51 = tpu.concatenate %40, %49 in 1 : vector<8x1xf32>, vector<8x1xf32> -> vector<8x2xf32>
    %52 = arith.maximumf %50, %51 : vector<8x2xf32>
    %c0_30 = arith.constant 0 : index
    %c0_31 = arith.constant 0 : index
    %53 = vector.load %arg8[%c0_30, %c0_31] : memref<8x2xf32, #tpu.memory_space<vmem>>, vector<8x2xf32>
    tpu.vector_store %arg8[%c0_30, %c0_31], %52 {strides = array<i32>} : memref<8x2xf32, #tpu.memory_space<vmem>>, vector<8x2xf32>,
    return
  }
  func.func @transform_0(%arg0: i32) -> (i32, i32) {
    %c0_i32 = arith.constant 0 : i32
    %c0_i32_0 = arith.constant 0 : i32
    %c0_i32_1 = arith.constant 0 : i32
    return %c0_i32, %c0_i32_0 : i32, i32
  }
  func.func @transform_1(%arg0: i32) -> (i32, i32) {
    %c0_i32 = arith.constant 0 : i32
    %c0_i32_0 = arith.constant 0 : i32
    return %arg0, %c0_i32 : i32, i32
  }
  func.func @transform_2(%arg0: i32) -> (i32, i32) {
    %c0_i32 = arith.constant 0 : i32
    %c0_i32_0 = arith.constant 0 : i32
    return %c0_i32, %arg0 : i32, i32
  }
  func.func @transform_3(%arg0: i32) -> (i32, i32) {
    %c0_i32 = arith.constant 0 : i32
    %c0_i32_0 = arith.constant 0 : i32
    %c0_i32_1 = arith.constant 0 : i32
    return %c0_i32, %c0_i32_0 : i32, i32
  }
  func.func @transform_4(%arg0: i32) -> (i32, i32) {
    %c0_i32 = arith.constant 0 : i32
    %c0_i32_0 = arith.constant 0 : i32
    return %c0_i32, %arg0 : i32, i32
  }
  func.func @transform_5(%arg0: i32) -> (i32, i32) {
    %c0_i32 = arith.constant 0 : i32
    %c0_i32_0 = arith.constant 0 : i32
    %c0_i32_1 = arith.constant 0 : i32
    return %c0_i32, %c0_i32_0 : i32, i32
  }
  func.func @transform_6(%arg0: i32) -> (i32, i32) {
    %c0_i32 = arith.constant 0 : i32
    %c0_i32_0 = arith.constant 0 : i32
    %c0_i32_1 = arith.constant 0 : i32
    return %c0_i32, %c0_i32_0 : i32, i32
  }
  func.func @transform_7(%arg0: i32) -> (i32, i32) {
    %c0_i32 = arith.constant 0 : i32
    %c0_i32_0 = arith.constant 0 : i32
    %c0_i32_1 = arith.constant 0 : i32
    return %c0_i32, %c0_i32_0 : i32, i32
  }
}

</mosaic_0001>

<llo_original>
// kernel: tpu_custom_call.1
$region0: #{tpu_custom_call.1}
  #allocation0 [shape = 'u32[]', space=smem, size = 0x4, offset = 0x4, fixed_abs, tag = 'smem constant byte address 0x4 - core index']
  #allocation1 [shape = 'u32[144,128]{1,0:T(1,128)}', space=vmem, size = 0x12000, scoped, tag = 'internal scratch']
  #allocation2 [shape = 'bf16[8,32]{1,0:T(8,128)(2,1)}', space=vmem, size = 0x800, scoped, tag = 'scratch operand']
  %s0 = inlined_call_operand.vmem [shape: f32[8,32], index: 0, kind: input, shape index: {}]
  %s1 = inlined_call_operand.vmem [shape: bf16[1024,32], index: 1, kind: input, shape index: {}]
  %s2 = inlined_call_operand.vmem [shape: s32[1,1024], index: 2, kind: input, shape index: {}]
  %s3 = inlined_call_operand.vmem [shape: s32[8,1], index: 3, kind: input, shape index: {}]
  %s4 = inlined_call_operand.hbm [shape: f32[8,1024], index: 4, kind: output, shape index: {0}]
  %s5 = inlined_call_operand.vmem [shape: f32[8,1], index: 5, kind: output, shape index: {1}]
  %s6 = inlined_call_operand.vmem [shape: f32[8,1], index: 6, kind: output, shape index: {2}]
  %s7 = inlined_call_operand.vmem [shape: f32[8,2], index: 7, kind: output, shape index: {3}]
  %8 = xla_tuple %s4, %s5, %s6, %s7
  %s9 = sld [smem:[#allocation0]]
  $region77: #{tpu_custom_call.1} parent=0
    _
  %s11 = ssub.s32 1, %s9
  %s12 = scalar_select 0, %s11, %s9
  $region1: #{tpu_custom_call.1} parent=0
    #allocation3 [shape = 'u8[32768]{0}', space=vmem, size = 0x8000, scoped, tag = 'output window, operand 0']
    #allocation4 [shape = 's32[2]{0}', space=sflag, size = 0x8, scoped, tag = 'scoped memory for tpu_custom_call.1']
    %13 = vsyncpa [#allocation4], 0
    %s14 = scalar_lea.sflag [#allocation4], 1
    %15 = vsyncpa %s14, 0
    loop: start=0, step=1, limit=4
    $region2: #{tpu_custom_call.1} parent=1 // loop_pre_header
      _
    $region3: #{tpu_custom_call.1} parent=1 // loop_header
      %s17 = sphi 0, %s21
      %p18 = scmp.ge.s32.totalorder %s17, 4
      %s25 = sphi 0, %s25
      %s27 = sphi 0, %s25
      %s28 = sphi 0, %s27
      %s42 = sphi 0, %s28
      %s48 = sphi 0, %s50
      %s51 = sphi 0, %s48
      %s52 = sphi 0, %s51
      %s68 = sphi 0, %s52
      %s74 = sphi 0, %s76
      %s77 = sphi 0, %s74
      %s78 = sphi 0, %s77
      %s94 = sphi 0, %s78
      %s98 = sphi 0, %s98
      %s100 = sphi 0, %s98
      %s101 = sphi 0, %s100
      %s115 = sphi 0, %s101
      %s121 = sphi 0, %s123
      %s124 = sphi 0, %s121
      %s125 = sphi 0, %s124
      %s141 = sphi 0, %s125
      %s145 = sphi 0, %s145
      %s147 = sphi 0, %s145
      %s148 = sphi 0, %s147
      %s162 = sphi 0, %s148
      %s166 = sphi 0, %s166
      %s168 = sphi 0, %s166
      %s169 = sphi 0, %s168
      %s183 = sphi 0, %s169
      %s187 = sphi 0, %s187
      %s189 = sphi 0, %s187
      %s190 = sphi 0, %s189
      %s204 = sphi 0, %s190
    $region4: #{tpu_custom_call.1} parent=1 // loop_header_branch
      %20 = sbr.rel (%p18) target = $region8
    $region5: #{tpu_custom_call.1} parent=1 // loop_body
      %s22 = ssub.s32 %s17, 1
      %s23 = ssub.s32 %s17, 2
      %s24 = sadd.s32 %s17, 1
      %s26 = sadd.s32 %s25, 1
      %p29 = scmp.eq.s32.totalorder %s17, 1
      %p30 = scmp.ne.s32.totalorder %s25, %s27
      %p31 = scmp.eq.s32.totalorder %s17, 0
      %p32 = por %p30, %p31
      %p33 = scmp.ne.s32.totalorder %s25, %s27
      %p34 = scmp.eq.s32.totalorder %s22, 1
      %p35 = por %p33, %p34
      %p36 = scmp.ne.s32.totalorder %s27, %s28
      %p37 = scmp.eq.s32.totalorder %s22, 0
      %p38 = por %p36, %p37
      %p39 = scmp.ne.s32.totalorder %s27, %s28
      %p40 = scmp.eq.s32.totalorder %s23, 1
      %p41 = por %p39, %p40
      %p43 = scmp.ne.s32.totalorder %s28, %s42
      %p44 = scmp.eq.s32.totalorder %s23, 0
      %p45 = por %p43, %p44
      %s46 = ssub.s32 %s17, %s24
      %p47 = scmp.eq.s32.totalorder %s46, 0
      %s49 = sadd.s32 %s48, 1
      %s50 = scalar_select %p47, %s48, %s49
      %p53 = pneg %p47
      %p54 = scmp.eq.s32.totalorder %s17, 1
      %p55 = por %p53, %p54
      %p56 = scmp.ne.s32.totalorder %s48, %s51
      %p57 = scmp.eq.s32.totalorder %s17, 0
      %p58 = por %p56, %p57
      %p59 = scmp.ne.s32.totalorder %s48, %s51
      %p60 = scmp.eq.s32.totalorder %s22, 1
      %p61 = por %p59, %p60
      %p62 = scmp.ne.s32.totalorder %s51, %s52
      %p63 = scmp.eq.s32.totalorder %s22, 0
      %p64 = por %p62, %p63
      %p65 = scmp.ne.s32.totalorder %s51, %s52
      %p66 = scmp.eq.s32.totalorder %s23, 1
      %p67 = por %p65, %p66
      %p69 = scmp.ne.s32.totalorder %s52, %s68
      %p70 = scmp.eq.s32.totalorder %s23, 0
      %p71 = por %p69, %p70
      %s72 = ssub.s32 %s17, %s24
      %p73 = scmp.eq.s32.totalorder %s72, 0
      %s75 = sadd.s32 %s74, 1
      %s76 = scalar_select %p73, %s74, %s75
      %p79 = pneg %p73
      %p80 = scmp.eq.s32.totalorder %s17, 1
      %p81 = por %p79, %p80
      %p82 = scmp.ne.s32.totalorder %s74, %s77
      %p83 = scmp.eq.s32.totalorder %s17, 0
      %p84 = por %p82, %p83
      %p85 = scmp.ne.s32.totalorder %s74, %s77
      %p86 = scmp.eq.s32.totalorder %s22, 1
      %p87 = por %p85, %p86
      %p88 = scmp.ne.s32.totalorder %s77, %s78
      %p89 = scmp.eq.s32.totalorder %s22, 0
      %p90 = por %p88, %p89
      %p91 = scmp.ne.s32.totalorder %s77, %s78
      %p92 = scmp.eq.s32.totalorder %s23, 1
      %p93 = por %p91, %p92
      %p95 = scmp.ne.s32.totalorder %s78, %s94
      %p96 = scmp.eq.s32.totalorder %s23, 0
      %p97 = por %p95, %p96
      %s99 = sadd.s32 %s98, 1
      %p102 = scmp.eq.s32.totalorder %s17, 1
      %p103 = scmp.ne.s32.totalorder %s98, %s100
      %p104 = scmp.eq.s32.totalorder %s17, 0
      %p105 = por %p103, %p104
      %p106 = scmp.ne.s32.totalorder %s98, %s100
      %p107 = scmp.eq.s32.totalorder %s22, 1
      %p108 = por %p106, %p107
      %p109 = scmp.ne.s32.totalorder %s100, %s101
      %p110 = scmp.eq.s32.totalorder %s22, 0
      %p111 = por %p109, %p110
      %p112 = scmp.ne.s32.totalorder %s100, %s101
      %p113 = scmp.eq.s32.totalorder %s23, 1
      %p114 = por %p112, %p113
      %p116 = scmp.ne.s32.totalorder %s101, %s115
      %p117 = scmp.eq.s32.totalorder %s23, 0
      %p118 = por %p116, %p117
      %s119 = ssub.s32 %s17, %s24
      %p120 = scmp.eq.s32.totalorder %s119, 0
      %s122 = sadd.s32 %s121, 1
      %s123 = scalar_select %p120, %s121, %s122
      %p126 = pneg %p120
      %p127 = scmp.eq.s32.totalorder %s17, 1
      %p128 = por %p126, %p127
      %p129 = scmp.ne.s32.totalorder %s121, %s124
      %p130 = scmp.eq.s32.totalorder %s17, 0
      %p131 = por %p129, %p130
      %p132 = scmp.ne.s32.totalorder %s121, %s124
      %p133 = scmp.eq.s32.totalorder %s22, 1
      %p134 = por %p132, %p133
      %p135 = scmp.ne.s32.totalorder %s124, %s125
      %p136 = scmp.eq.s32.totalorder %s22, 0
      %p137 = por %p135, %p136
      %p138 = scmp.ne.s32.totalorder %s124, %s125
      %p139 = scmp.eq.s32.totalorder %s23, 1
      %p140 = por %p138, %p139
      %p142 = scmp.ne.s32.totalorder %s125, %s141
      %p143 = scmp.eq.s32.totalorder %s23, 0
      %p144 = por %p142, %p143
      %s146 = sadd.s32 %s145, 1
      %p149 = scmp.eq.s32.totalorder %s17, 1
      %p150 = scmp.ne.s32.totalorder %s145, %s147
      %p151 = scmp.eq.s32.totalorder %s17, 0
      %p152 = por %p150, %p151
      %p153 = scmp.ne.s32.totalorder %s145, %s147
      %p154 = scmp.eq.s32.totalorder %s22, 1
      %p155 = por %p153, %p154
      %p156 = scmp.ne.s32.totalorder %s147, %s148
      %p157 = scmp.eq.s32.totalorder %s22, 0
      %p158 = por %p156, %p157
      %p159 = scmp.ne.s32.totalorder %s147, %s148
      %p160 = scmp.eq.s32.totalorder %s23, 1
      %p161 = por %p159, %p160
      %p163 = scmp.ne.s32.totalorder %s148, %s162
      %p164 = scmp.eq.s32.totalorder %s23, 0
      %p165 = por %p163, %p164
      %s167 = sadd.s32 %s166, 1
      %p170 = scmp.eq.s32.totalorder %s17, 1
      %p171 = scmp.ne.s32.totalorder %s166, %s168
      %p172 = scmp.eq.s32.totalorder %s17, 0
      %p173 = por %p171, %p172
      %p174 = scmp.ne.s32.totalorder %s166, %s168
      %p175 = scmp.eq.s32.totalorder %s22, 1
      %p176 = por %p174, %p175
      %p177 = scmp.ne.s32.totalorder %s168, %s169
      %p178 = scmp.eq.s32.totalorder %s22, 0
      %p179 = por %p177, %p178
      %p180 = scmp.ne.s32.totalorder %s168, %s169
      %p181 = scmp.eq.s32.totalorder %s23, 1
      %p182 = por %p180, %p181
      %p184 = scmp.ne.s32.totalorder %s169, %s183
      %p185 = scmp.eq.s32.totalorder %s23, 0
      %p186 = por %p184, %p185
      %s188 = sadd.s32 %s187, 1
      %p191 = scmp.eq.s32.totalorder %s17, 1
      %p192 = scmp.ne.s32.totalorder %s187, %s189
      %p193 = scmp.eq.s32.totalorder %s17, 0
      %p194 = por %p192, %p193
      %p195 = scmp.ne.s32.totalorder %s187, %s189
      %p196 = scmp.eq.s32.totalorder %s22, 1
      %p197 = por %p195, %p196
      %p198 = scmp.ne.s32.totalorder %s189, %s190
      %p199 = scmp.eq.s32.totalorder %s22, 0
      %p200 = por %p198, %p199
      %p201 = scmp.ne.s32.totalorder %s189, %s190
      %p202 = scmp.eq.s32.totalorder %s23, 1
      %p203 = por %p201, %p202
      %p205 = scmp.ne.s32.totalorder %s190, %s204
      %p206 = scmp.eq.s32.totalorder %s23, 0
      %p207 = por %p205, %p206
      %p208 = scmp.le.s32.totalorder 1, %s17
      %p209 = scmp.lt.s32.totalorder %s17, 3
      %p210 = pnand %p208, %p209
      %p211 = pneg %p210
      // Predicated region
      $region9: #{tpu_custom_call.1} parent=5 // pred_check
        _
      $region10: #{tpu_custom_call.1} parent=5 // pred_check_branch
        %213 = sbr.rel (%p210) target = $region12
      $region11: #{tpu_custom_call.1} parent=5 // pred_region
        %s214 = ssub.s32 %s17, 1
        // Predicated region
        $region13: #{tpu_custom_call.1} parent=11 // pred_check
          %p215 = pneg %p38
        $region14: #{tpu_custom_call.1} parent=11 // pred_check_branch
          %217 = sbr.rel (%p215) target = $region16
        $region15: #{tpu_custom_call.1} parent=11 // pred_region
          _
        $region16: #{tpu_custom_call.1} parent=11 // pred_fallthru
          _
        // Predicated region
        $region17: #{tpu_custom_call.1} parent=11 // pred_check
          %p218 = pneg %p111
        $region18: #{tpu_custom_call.1} parent=11 // pred_check_branch
          %220 = sbr.rel (%p218) target = $region20
        $region19: #{tpu_custom_call.1} parent=11 // pred_region
          _
        $region20: #{tpu_custom_call.1} parent=11 // pred_fallthru
          _
      $region12: #{tpu_custom_call.1} parent=5 // pred_fallthru
        _
      %p221 = scmp.lt.s32.totalorder %s17, 2
      // Predicated region
      $region21: #{tpu_custom_call.1} parent=5 // pred_check
        %p222 = pneg %p221
      $region22: #{tpu_custom_call.1} parent=5 // pred_check_branch
        %224 = sbr.rel (%p222) target = $region24
      $region23: #{tpu_custom_call.1} parent=5 // pred_region
        // Predicated region
        $region25: #{tpu_custom_call.1} parent=23 // pred_check
          %p225 = pneg %p58
        $region26: #{tpu_custom_call.1} parent=23 // pred_check_branch
          %227 = sbr.rel (%p225) target = $region28
        $region27: #{tpu_custom_call.1} parent=23 // pred_region
          %s228 = smul.u32 64, %s17
          %p229 = scmp.lt.s32.totalorder %s228, 127
          %s230 = scalar_select %p229, %s228, 127
          %s231 = smul.addr %s230, 4
          %s232 = scalar_lea.vmem %s1, %s231
          %s233 = smul.u32 64, %s17
        $region28: #{tpu_custom_call.1} parent=23 // pred_fallthru
          _
        // Predicated region
        $region29: #{tpu_custom_call.1} parent=23 // pred_check
          %p234 = pneg %p84
        $region30: #{tpu_custom_call.1} parent=23 // pred_check_branch
          %236 = sbr.rel (%p234) target = $region32
        $region31: #{tpu_custom_call.1} parent=23 // pred_region
          %s237 = smul.u32 4, %s17
          %p238 = scmp.lt.s32.totalorder %s237, 7
          %s239 = scalar_select %p238, %s237, 7
          %s240 = scalar_lea.vmem %s2, %s239
          %s241 = smul.u32 4, %s17
        $region32: #{tpu_custom_call.1} parent=23 // pred_fallthru
          _
      $region24: #{tpu_custom_call.1} parent=5 // pred_fallthru
        _
      %p242 = scmp.le.s32.totalorder 1, %s17
      %p243 = scmp.lt.s32.totalorder %s17, 3
      %p244 = pnand %p242, %p243
      %p245 = pneg %p244
      // Predicated region
      $region33: #{tpu_custom_call.1} parent=5 // pred_check
        _
      $region34: #{tpu_custom_call.1} parent=5 // pred_check_branch
        %247 = sbr.rel (%p244) target = $region36
      $region35: #{tpu_custom_call.1} parent=5 // pred_region
        %s248 = ssub.s32 %s17, 1
        %p249 = pneg %p38
        %p250 = pneg %p35
        %s251 = smul.u32 64, %s22
        %p252 = scmp.lt.s32.totalorder %s251, 127
        %s253 = scalar_select %p252, %s251, 127
        %s254 = smul.addr %s253, 4
        %s255 = scalar_lea.vmem %s1, %s254
        %p256 = pneg %p64
        %p257 = pneg %p61
        %s258 = smul.u32 4, %s22
        %p259 = scmp.lt.s32.totalorder %s258, 7
        %s260 = scalar_select %p259, %s258, 7
        %s261 = scalar_lea.vmem %s2, %s260
        %p262 = pneg %p90
        %p263 = pneg %p87
        %p264 = pneg %p111
        %p265 = pneg %p108
        %p266 = pneg %p137
        %p267 = pneg %p134
        %s268 = sand.u32 %s124, 1
        %s269 = scalar_lea.sflag [#allocation4], %s268
        %s270 = sand.u32 %s124, 1
        %s271 = smul.addr %s270, 32
        %s272 = scalar_lea.vmem [#allocation3], %s271
        %p273 = pneg %p158
        %p274 = pneg %p155
        %p275 = pneg %p179
        %p276 = pneg %p176
        %p277 = pneg %p200
        %p278 = pneg %p197
        %s279 = smul.u32 64, %s22
        %p280 = scmp.lt.s32.totalorder %s279, 127
        %s281 = scalar_select %p280, %s279, 127
        %s282 = smul.addr %s281, 4
        %s283 = scalar_lea.vmem %s1, %s282
        %s284 = smul.u32 64, %s22
        %s285 = smul.u32 4, %s22
        %p286 = scmp.lt.s32.totalorder %s285, 7
        %s287 = scalar_select %p286, %s285, 7
        %s288 = scalar_lea.vmem %s2, %s287
        %s289 = smul.u32 4, %s22
        %s290 = smul.u32 4, %s22
        %p292 = scmp.eq.s32.totalorder %s22, 0
        // Predicated region
        $region37: #{tpu_custom_call.1} parent=35 // pred_check
          %p293 = pneg %p292
        $region38: #{tpu_custom_call.1} parent=35 // pred_check_branch
          %295 = sbr.rel (%p293) target = $region40
        $region39: #{tpu_custom_call.1} parent=35 // pred_region
          %vm296 = vcmask 7168
          %297 = vst.msk [vmem:[%s5] sm:$0xff] %vm296, -inf
          %298 = vst.msk [vmem:[%s6] sm:$0xff] %vm296, 0.0
          %vm299 = vcmask 15360
          %300 = vst.msk [vmem:[%s7] sm:$0xff] %vm299, -inf
          %v301 = vld [vmem:[%s0] sm:$0xff]
          %v302 = vmul.f32 %v301, %v301
          %vm303 = vcmask 261120
          %v304 = vsel %vm303, %v302, 0.0
          %305 = vadd.xlane.f32.xlu0 %v304
          %v306 = vpop.xlane.xlu0 %305
          %v307 = vmax.f32 %v306, 1e-24
          %v308 = vrsqrt.pop %v307
          %v309 = vmul.f32 %v301, %v308
          %v310 = vpack.c.bf16 %v309, %v309
          %vm311 = vcmask 257024
          %312 = vst.msk [vmem:[#allocation2] sm:$0xf] %vm311, %v310
        $region40: #{tpu_custom_call.1} parent=35 // pred_fallthru
          _
        %v313 = vld [vmem:[#allocation2] sm:$0xf]
        %v314 = vld [vmem:[%s283] sm:$0xf]
        %v315 = vld [vmem:[%s283 + $0x4] sm:$0xf]
        %v316 = vld [vmem:[%s283 + $0x8] sm:$0xf]
        %v317 = vld [vmem:[%s283 + $0xc] sm:$0xf]
        %v318 = vld [vmem:[%s283 + $0x10] sm:$0xf]
        %v319 = vld [vmem:[%s283 + $0x14] sm:$0xf]
        %v320 = vld [vmem:[%s283 + $0x18] sm:$0xf]
        %v321 = vld [vmem:[%s283 + $0x1c] sm:$0xf]
        %v322 = vld [vmem:[%s283 + $0x20] sm:$0xf]
        %v323 = vld [vmem:[%s283 + $0x24] sm:$0xf]
        %v324 = vld [vmem:[%s283 + $0x28] sm:$0xf]
        %v325 = vld [vmem:[%s283 + $0x2c] sm:$0xf]
        %v326 = vld [vmem:[%s283 + $0x30] sm:$0xf]
        %v327 = vld [vmem:[%s283 + $0x34] sm:$0xf]
        %v328 = vld [vmem:[%s283 + $0x38] sm:$0xf]
        %v329 = vld [vmem:[%s283 + $0x3c] sm:$0xf]
        %v330 = vld [vmem:[%s283 + $0x40] sm:$0xf]
        %v331 = vld [vmem:[%s283 + $0x44] sm:$0xf]
        %v332 = vld [vmem:[%s283 + $0x48] sm:$0xf]
        %v333 = vld [vmem:[%s283 + $0x4c] sm:$0xf]
        %v334 = vld [vmem:[%s283 + $0x50] sm:$0xf]
        %v335 = vld [vmem:[%s283 + $0x54] sm:$0xf]
        %v336 = vld [vmem:[%s283 + $0x58] sm:$0xf]
        %v337 = vld [vmem:[%s283 + $0x5c] sm:$0xf]
        %v338 = vld [vmem:[%s283 + $0x60] sm:$0xf]
        %v339 = vld [vmem:[%s283 + $0x64] sm:$0xf]
        %v340 = vld [vmem:[%s283 + $0x68] sm:$0xf]
        %v341 = vld [vmem:[%s283 + $0x6c] sm:$0xf]
        %v342 = vld [vmem:[%s283 + $0x70] sm:$0xf]
        %v343 = vld [vmem:[%s283 + $0x74] sm:$0xf]
        %v344 = vld [vmem:[%s283 + $0x78] sm:$0xf]
        %v345 = vld [vmem:[%s283 + $0x7c] sm:$0xf]
        %v346 = vld [vmem:[%s283 + $0x80] sm:$0xf]
        %v347 = vld [vmem:[%s283 + $0x84] sm:$0xf]
        %v348 = vld [vmem:[%s283 + $0x88] sm:$0xf]
        %v349 = vld [vmem:[%s283 + $0x8c] sm:$0xf]
        %v350 = vld [vmem:[%s283 + $0x90] sm:$0xf]
        %v351 = vld [vmem:[%s283 + $0x94] sm:$0xf]
        %v352 = vld [vmem:[%s283 + $0x98] sm:$0xf]
        %v353 = vld [vmem:[%s283 + $0x9c] sm:$0xf]
        %v354 = vld [vmem:[%s283 + $0xa0] sm:$0xf]
        %v355 = vld [vmem:[%s283 + $0xa4] sm:$0xf]
        %v356 = vld [vmem:[%s283 + $0xa8] sm:$0xf]
        %v357 = vld [vmem:[%s283 + $0xac] sm:$0xf]
        %v358 = vld [vmem:[%s283 + $0xb0] sm:$0xf]
        %v359 = vld [vmem:[%s283 + $0xb4] sm:$0xf]
        %v360 = vld [vmem:[%s283 + $0xb8] sm:$0xf]
        %v361 = vld [vmem:[%s283 + $0xbc] sm:$0xf]
        %v362 = vld [vmem:[%s283 + $0xc0] sm:$0xf]
        %v363 = vld [vmem:[%s283 + $0xc4] sm:$0xf]
        %v364 = vld [vmem:[%s283 + $0xc8] sm:$0xf]
        %v365 = vld [vmem:[%s283 + $0xcc] sm:$0xf]
        %v366 = vld [vmem:[%s283 + $0xd0] sm:$0xf]
        %v367 = vld [vmem:[%s283 + $0xd4] sm:$0xf]
        %v368 = vld [vmem:[%s283 + $0xd8] sm:$0xf]
        %v369 = vld [vmem:[%s283 + $0xdc] sm:$0xf]
        %v370 = vld [vmem:[%s283 + $0xe0] sm:$0xf]
        %v371 = vld [vmem:[%s283 + $0xe4] sm:$0xf]
        %v372 = vld [vmem:[%s283 + $0xe8] sm:$0xf]
        %v373 = vld [vmem:[%s283 + $0xec] sm:$0xf]
        %v374 = vld [vmem:[%s283 + $0xf0] sm:$0xf]
        %v375 = vld [vmem:[%s283 + $0xf4] sm:$0xf]
        %v376 = vld [vmem:[%s283 + $0xf8] sm:$0xf]
        %v377 = vld [vmem:[%s283 + $0xfc] sm:$0xf]
        %v442 = vunpack.c.l.b16 %v314
        %v443 = vunpack.c.l.b16 %v315
        %v444 = vunpack.c.l.b16 %v316
        %v445 = vunpack.c.l.b16 %v317
        %v446 = vunpack.c.l.b16 %v318
        %v447 = vunpack.c.l.b16 %v319
        %v448 = vunpack.c.l.b16 %v320
        %v449 = vunpack.c.l.b16 %v321
        %v450 = vunpack.c.l.b16 %v322
        %v451 = vunpack.c.l.b16 %v323
        %v452 = vunpack.c.l.b16 %v324
        %v453 = vunpack.c.l.b16 %v325
        %v454 = vunpack.c.l.b16 %v326
        %v455 = vunpack.c.l.b16 %v327
        %v456 = vunpack.c.l.b16 %v328
        %v457 = vunpack.c.l.b16 %v329
        %v458 = vunpack.c.l.b16 %v330
        %v459 = vunpack.c.l.b16 %v331
        %v460 = vunpack.c.l.b16 %v332
        %v461 = vunpack.c.l.b16 %v333
        %v462 = vunpack.c.l.b16 %v334
        %v463 = vunpack.c.l.b16 %v335
        %v464 = vunpack.c.l.b16 %v336
        %v465 = vunpack.c.l.b16 %v337
        %v466 = vunpack.c.l.b16 %v338
        %v467 = vunpack.c.l.b16 %v339
        %v468 = vunpack.c.l.b16 %v340
        %v469 = vunpack.c.l.b16 %v341
        %v470 = vunpack.c.l.b16 %v342
        %v471 = vunpack.c.l.b16 %v343
        %v472 = vunpack.c.l.b16 %v344
        %v473 = vunpack.c.l.b16 %v345
        %v474 = vunpack.c.l.b16 %v346
        %v475 = vunpack.c.l.b16 %v347
        %v476 = vunpack.c.l.b16 %v348
        %v477 = vunpack.c.l.b16 %v349
        %v478 = vunpack.c.l.b16 %v350
        %v479 = vunpack.c.l.b16 %v351
        %v480 = vunpack.c.l.b16 %v352
        %v481 = vunpack.c.l.b16 %v353
        %v482 = vunpack.c.l.b16 %v354
        %v483 = vunpack.c.l.b16 %v355
        %v484 = vunpack.c.l.b16 %v356
        %v485 = vunpack.c.l.b16 %v357
        %v486 = vunpack.c.l.b16 %v358
        %v487 = vunpack.c.l.b16 %v359
        %v488 = vunpack.c.l.b16 %v360
        %v489 = vunpack.c.l.b16 %v361
        %v490 = vunpack.c.l.b16 %v362
        %v491 = vunpack.c.l.b16 %v363
        %v492 = vunpack.c.l.b16 %v364
        %v493 = vunpack.c.l.b16 %v365
        %v494 = vunpack.c.l.b16 %v366
        %v495 = vunpack.c.l.b16 %v367
        %v496 = vunpack.c.l.b16 %v368
        %v497 = vunpack.c.l.b16 %v369
        %v498 = vunpack.c.l.b16 %v370
        %v499 = vunpack.c.l.b16 %v371
        %v500 = vunpack.c.l.b16 %v372
        %v501 = vunpack.c.l.b16 %v373
        %v502 = vunpack.c.l.b16 %v374
        %v503 = vunpack.c.l.b16 %v375
        %v504 = vunpack.c.l.b16 %v376
        %v505 = vunpack.c.l.b16 %v377
        %v506 = vpack.c.b16 %v443, %v442
        %v507 = vpack.c.b16 %v445, %v444
        %v508 = vpack.c.b16 %v447, %v446
        %v509 = vpack.c.b16 %v449, %v448
        %v510 = vpack.c.b16 %v451, %v450
        %v511 = vpack.c.b16 %v453, %v452
        %v512 = vpack.c.b16 %v455, %v454
        %v513 = vpack.c.b16 %v457, %v456
        %v514 = vpack.c.b16 %v459, %v458
        %v515 = vpack.c.b16 %v461, %v460
        %v516 = vpack.c.b16 %v463, %v462
        %v517 = vpack.c.b16 %v465, %v464
        %v518 = vpack.c.b16 %v467, %v466
        %v519 = vpack.c.b16 %v469, %v468
        %v520 = vpack.c.b16 %v471, %v470
        %v521 = vpack.c.b16 %v473, %v472
        %v522 = vpack.c.b16 %v475, %v474
        %v523 = vpack.c.b16 %v477, %v476
        %v524 = vpack.c.b16 %v479, %v478
        %v525 = vpack.c.b16 %v481, %v480
        %v526 = vpack.c.b16 %v483, %v482
        %v527 = vpack.c.b16 %v485, %v484
        %v528 = vpack.c.b16 %v487, %v486
        %v529 = vpack.c.b16 %v489, %v488
        %v530 = vpack.c.b16 %v491, %v490
        %v531 = vpack.c.b16 %v493, %v492
        %v532 = vpack.c.b16 %v495, %v494
        %v533 = vpack.c.b16 %v497, %v496
        %v534 = vpack.c.b16 %v499, %v498
        %v535 = vpack.c.b16 %v501, %v500
        %v536 = vpack.c.b16 %v503, %v502
        %v537 = vpack.c.b16 %v505, %v504
        %vm538 = vcmask 261120
        %v540 = vsel %vm538, %v313, 0
        %v543 = vsel %vm538, %v506, 0
        %v546 = vsel %vm538, %v507, 0
        %v549 = vsel %vm538, %v508, 0
        %v552 = vsel %vm538, %v509, 0
        %v555 = vsel %vm538, %v510, 0
        %v558 = vsel %vm538, %v511, 0
        %v561 = vsel %vm538, %v512, 0
        %v564 = vsel %vm538, %v513, 0
        %v567 = vsel %vm538, %v514, 0
        %v570 = vsel %vm538, %v515, 0
        %v573 = vsel %vm538, %v516, 0
        %v576 = vsel %vm538, %v517, 0
        %v579 = vsel %vm538, %v518, 0
        %v582 = vsel %vm538, %v519, 0
        %v585 = vsel %vm538, %v520, 0
        %v588 = vsel %vm538, %v521, 0
        %v591 = vsel %vm538, %v522, 0
        %v594 = vsel %vm538, %v523, 0
        %v597 = vsel %vm538, %v524, 0
        %v600 = vsel %vm538, %v525, 0
        %v603 = vsel %vm538, %v526, 0
        %v606 = vsel %vm538, %v527, 0
        %v609 = vsel %vm538, %v528, 0
        %v612 = vsel %vm538, %v529, 0
        %v615 = vsel %vm538, %v530, 0
        %v618 = vsel %vm538, %v531, 0
        %v621 = vsel %vm538, %v532, 0
        %v624 = vsel %vm538, %v533, 0
        %v627 = vsel %vm538, %v534, 0
        %v630 = vsel %vm538, %v535, 0
        %v633 = vsel %vm538, %v536, 0
        %v636 = vsel %vm538, %v537, 0
        %638 = vmatprep.subr.bf16.mxu0 0
        %639 = vmatpush1.bf16.xpose.msra.mxu0 %v543
        %640 = vmatprep.subr.bf16.mxu0 0
        %641 = vmatpush1.bf16.xpose.msra.mxu0 %v546
        %642 = vmatprep.subr.bf16.mxu0 0
        %643 = vmatpush1.bf16.xpose.msra.mxu0 %v549
        %644 = vmatprep.subr.bf16.mxu0 0
        %645 = vmatpush1.bf16.xpose.msra.mxu0 %v552
        %646 = vmatprep.subr.bf16.mxu0 0
        %647 = vmatpush1.bf16.xpose.msra.mxu0 %v555
        %648 = vmatprep.subr.bf16.mxu0 0
        %649 = vmatpush1.bf16.xpose.msra.mxu0 %v558
        %650 = vmatprep.subr.bf16.mxu0 0
        %651 = vmatpush1.bf16.xpose.msra.mxu0 %v561
        %652 = vmatprep.subr.bf16.mxu0 0
        %653 = vmatpush1.bf16.xpose.msra.mxu0 %v564
        %654 = vmatprep.subr.bf16.mxu0 0
        %655 = vmatpush1.bf16.xpose.msra.mxu0 %v567
        %656 = vmatprep.subr.bf16.mxu0 0
        %657 = vmatpush1.bf16.xpose.msra.mxu0 %v570
        %658 = vmatprep.subr.bf16.mxu0 0
        %659 = vmatpush1.bf16.xpose.msra.mxu0 %v573
        %660 = vmatprep.subr.bf16.mxu0 0
        %661 = vmatpush1.bf16.xpose.msra.mxu0 %v576
        %662 = vmatprep.subr.bf16.mxu0 0
        %663 = vmatpush1.bf16.xpose.msra.mxu0 %v579
        %664 = vmatprep.subr.bf16.mxu0 0
        %665 = vmatpush1.bf16.xpose.msra.mxu0 %v582
        %666 = vmatprep.subr.bf16.mxu0 0
        %667 = vmatpush1.bf16.xpose.msra.mxu0 %v585
        %668 = vmatprep.subr.bf16.mxu0 0
        %669 = vmatpush1.bf16.xpose.msra.mxu0 %v588
        %670 = vmatprep.mubr.bf16.mxu0 0
        %671 = vmatmul.mubr.bf16.gmra.mrb[0].mxu0 %v540
        %v672 = vpop.f32.mrb[0].mxu0
        %v673 = vadd.f32 0.0, %v672
        %v674 = vpop.f32.mrb[0].mxu0
        %v675 = vadd.f32 0.0, %v674
        %v676 = vpop.f32.mrb[0].mxu0
        %v677 = vpop.f32.mrb[0].mxu0
        %678 = vdwg.mxu0
        %679 = vmatprep.subr.bf16.mxu0 0
        %680 = vmatpush1.bf16.xpose.msra.mxu0 %v591
        %681 = vmatprep.subr.bf16.mxu0 0
        %682 = vmatpush1.bf16.xpose.msra.mxu0 %v594
        %683 = vmatprep.subr.bf16.mxu0 0
        %684 = vmatpush1.bf16.xpose.msra.mxu0 %v597
        %685 = vmatprep.subr.bf16.mxu0 0
        %686 = vmatpush1.bf16.xpose.msra.mxu0 %v600
        %687 = vmatprep.subr.bf16.mxu0 0
        %688 = vmatpush1.bf16.xpose.msra.mxu0 %v603
        %689 = vmatprep.subr.bf16.mxu0 0
        %690 = vmatpush1.bf16.xpose.msra.mxu0 %v606
        %691 = vmatprep.subr.bf16.mxu0 0
        %692 = vmatpush1.bf16.xpose.msra.mxu0 %v609
        %693 = vmatprep.subr.bf16.mxu0 0
        %694 = vmatpush1.bf16.xpose.msra.mxu0 %v612
        %695 = vmatprep.subr.bf16.mxu0 0
        %696 = vmatpush1.bf16.xpose.msra.mxu0 %v615
        %697 = vmatprep.subr.bf16.mxu0 0
        %698 = vmatpush1.bf16.xpose.msra.mxu0 %v618
        %699 = vmatprep.subr.bf16.mxu0 0
        %700 = vmatpush1.bf16.xpose.msra.mxu0 %v621
        %701 = vmatprep.subr.bf16.mxu0 0
        %702 = vmatpush1.bf16.xpose.msra.mxu0 %v624
        %703 = vmatprep.subr.bf16.mxu0 0
        %704 = vmatpush1.bf16.xpose.msra.mxu0 %v627
        %705 = vmatprep.subr.bf16.mxu0 0
        %706 = vmatpush1.bf16.xpose.msra.mxu0 %v630
        %707 = vmatprep.subr.bf16.mxu0 0
        %708 = vmatpush1.bf16.xpose.msra.mxu0 %v633
        %709 = vmatprep.subr.bf16.mxu0 0
        %710 = vmatpush1.bf16.xpose.msra.mxu0 %v636
        %711 = vmatprep.mubr.bf16.mxu0 0
        %712 = vmatmul.mubr.bf16.gmra.mrb[0].mxu0 %v540
        %v713 = vpop.f32.mrb[0].mxu0
        %v714 = vadd.f32 0.0, %v713
        %v715 = vpop.f32.mrb[0].mxu0
        %v716 = vadd.f32 0.0, %v715
        %v717 = vpop.f32.mrb[0].mxu0
        %v718 = vpop.f32.mrb[0].mxu0
        %719 = vdwg.mxu0
        %720 = vst [vmem:[%s272] sm:$0xff] %v673
        %721 = vst [vmem:[%s272 + $0x8] sm:$0xff] %v675
        %722 = vst [vmem:[%s272 + $0x10] sm:$0xff] %v714
        %723 = vst [vmem:[%s272 + $0x18] sm:$0xff] %v716
        %v724 = vmul.f32 %v673, 20.0
        %v725 = vmul.f32 %v675, 20.0
        %v726 = vmul.f32 %v714, 20.0
        %v727 = vmul.f32 %v716, 20.0
        %v728 = vld [vmem:[%s5] sm:$0xff]
        %v729 = vmax.f32 %v724, %v725
        %v730 = vmax.f32 %v726, %v727
        %v731 = vmax.f32 %v729, %v730
        %732 = vmax.xlane.f32.xlu0 %v731
        %v733 = vpop.xlane.xlu0 %732
        %v734 = vmax.f32 %v728, %v733
        %v735 = vld [vmem:[%s6] sm:$0xff]
        %v736 = vsub.f32 %v728, %v734
        %v737 = vmul.f32 %v736, 1.442695
        %v738 = vpow.pop %v737
        %v739 = vmul.f32 %v735, %v738
        %741 = vset.pattern.permute.xlu0 0
        %742 = vperm.xlu0 %741, %v734
        %v743 = vpop.permute.xlu0 %742
        %v745 = vsub.f32 %v724, %v743
        %v746 = vsub.f32 %v725, %v743
        %v747 = vsub.f32 %v726, %v743
        %v748 = vsub.f32 %v727, %v743
        %v749 = vmul.f32 %v745, 1.442695
        %v750 = vpow.pop %v749
        %v751 = vmul.f32 %v746, 1.442695
        %v752 = vpow.pop %v751
        %v753 = vmul.f32 %v747, 1.442695
        %v754 = vpow.pop %v753
        %v755 = vmul.f32 %v748, 1.442695
        %v756 = vpow.pop %v755
        %v757 = vadd.f32 %v750, %v752
        %v758 = vadd.f32 %v757, %v754
        %v759 = vadd.f32 %v758, %v756
        %760 = vadd.xlane.f32.xlu0 %v759
        %v761 = vpop.xlane.xlu0 %760
        %v762 = vadd.f32 %v739, %v761
        %vm763 = vcmask 7168
        %764 = vst.msk [vmem:[%s6] sm:$0xff] %vm763, %v762
        %765 = vst.msk [vmem:[%s5] sm:$0xff] %vm763, %v734
        %v766 = vlaneseq
        %v767 = vand.u32 %v766, 127
        %v768 = vadd.s32 %v767, 128
        %v769 = vadd.s32 %v767, 256
        %v770 = vadd.s32 %v767, 384
        %s771 = smul.u32 %s22, 512
        %v772 = vstv %s771
        %v773 = vadd.s32 %v767, %v772
        %v774 = vadd.s32 %v768, %v772
        %v775 = vadd.s32 %v769, %v772
        %v776 = vadd.s32 %v770, %v772
        %v777 = vld [vmem:[%s3] sm:$0xff]
        %778 = vset.pattern.permute.xlu0 0
        %779 = vperm.xlu0 %778, %v777
        %v780 = vpop.permute.xlu0 %779
        %vm781 = vcmp.ne.s32.totalorder %v773, %v780
        %vm782 = vcmp.ne.s32.totalorder %v774, %v780
        %vm783 = vcmp.ne.s32.totalorder %v775, %v780
        %vm784 = vcmp.ne.s32.totalorder %v776, %v780
        %v785 = vld [vmem:[%s288] sm:$0xf]
        %vm786 = vcmp.eq.s32.totalorder %v785, 0
        %v787 = vsel %vm786, 1, 0
        %v788 = vlaneseq
        %v789 = vshrl.u32 %v788, 7
        %v790 = vsub.s32 0, %v789
        %v791 = vrot.slane %v787, %v790
        %v792 = vlaneseq
        %v793 = vshrl.u32 %v792, 7
        %v794 = vsub.s32 1, %v793
        %v795 = vrot.slane %v787, %v794
        %v796 = vlaneseq
        %v797 = vshrl.u32 %v796, 7
        %v798 = vsub.s32 2, %v797
        %v799 = vrot.slane %v787, %v798
        %v800 = vlaneseq
        %v801 = vshrl.u32 %v800, 7
        %v802 = vsub.s32 3, %v801
        %v803 = vrot.slane %v787, %v802
        %vm804 = vcmp.eq.s32.totalorder %v791, 1
        %vm805 = vcmp.eq.s32.totalorder %v795, 1
        %vm806 = vcmp.eq.s32.totalorder %v799, 1
        %vm807 = vcmp.eq.s32.totalorder %v803, 1
        %vm808 = vmand %vm804, %vm781
        %vm809 = vmand %vm805, %vm782
        %vm810 = vmand %vm806, %vm783
        %vm811 = vmand %vm807, %vm784
        %v812 = vsel %vm808, %v673, -1.0
        %v813 = vsel %vm809, %v675, -1.0
        %v814 = vsel %vm810, %v714, -1.0
        %v815 = vsel %vm811, %v716, -1.0
        %v816 = vmax.f32 %v812, %v813
        %v817 = vmax.f32 %v814, %v815
        %v818 = vmax.f32 %v816, %v817
        %819 = vmax.xlane.f32.xlu0 %v818
        %v820 = vpop.xlane.xlu0 %819
        %vm821 = vcmp.eq.s32.totalorder %v785, 1
        %v822 = vsel %vm821, 1, 0
        %v823 = vlaneseq
        %v824 = vshrl.u32 %v823, 7
        %v825 = vsub.s32 0, %v824
        %v826 = vrot.slane %v822, %v825
        %v827 = vlaneseq
        %v828 = vshrl.u32 %v827, 7
        %v829 = vsub.s32 1, %v828
        %v830 = vrot.slane %v822, %v829
        %v831 = vlaneseq
        %v832 = vshrl.u32 %v831, 7
        %v833 = vsub.s32 2, %v832
        %v834 = vrot.slane %v822, %v833
        %v835 = vlaneseq
        %v836 = vshrl.u32 %v835, 7
        %v837 = vsub.s32 3, %v836
        %v838 = vrot.slane %v822, %v837
        %vm839 = vcmp.eq.s32.totalorder %v826, 1
        %vm840 = vcmp.eq.s32.totalorder %v830, 1
        %vm841 = vcmp.eq.s32.totalorder %v834, 1
        %vm842 = vcmp.eq.s32.totalorder %v838, 1
        %vm843 = vmand %vm839, %vm781
        %vm844 = vmand %vm840, %vm782
        %vm845 = vmand %vm841, %vm783
        %vm846 = vmand %vm842, %vm784
        %v847 = vsel %vm843, %v673, -1.0
        %v848 = vsel %vm844, %v675, -1.0
        %v849 = vsel %vm845, %v714, -1.0
        %v850 = vsel %vm846, %v716, -1.0
        %v851 = vmax.f32 %v847, %v848
        %v852 = vmax.f32 %v849, %v850
        %v853 = vmax.f32 %v851, %v852
        %854 = vmax.xlane.f32.xlu0 %v853
        %v855 = vpop.xlane.xlu0 %854
        %v856 = vld [vmem:[%s7] sm:$0xff]
        %v857 = vsel %vm763, %v820, %v855
        %v858 = vmax.f32 %v856, %v857
        %vm859 = vcmask 15360
        %860 = vst.msk [vmem:[%s7] sm:$0xff] %vm859, %v858
        %s861 = sand.u32 %s124, 1
        %s862 = scalar_lea.sflag [#allocation4], %s861
        %s863 = sand.u32 %s124, 1
        %s864 = smul.addr %s863, 32
        %s865 = scalar_lea.vmem [#allocation3], %s864
        // Predicated region
        $region41: #{tpu_custom_call.1} parent=35 // pred_check
          %p866 = pneg %p134
        $region42: #{tpu_custom_call.1} parent=35 // pred_check_branch
          %868 = sbr.rel (%p866) target = $region44
        $region43: #{tpu_custom_call.1} parent=35 // pred_region
          %s869 = smul.u32 4, %s22
          %s871 = ssub.s32 512, 512
          %872 = vsyncadd %s862, %s871
          %s873 = smul.addr %s869, 128
          %s874 = scalar_lea.hbm %s4, %s873
          %s876 = sshll.u32 %s865, 4
          %s877 = int_to_ptr.vmem [resolvable:$true] %s876
          %879 = dma.vmem_to_hbm [thread:$0]  %s877, 512, %s874, %s862
        $region44: #{tpu_custom_call.1} parent=35 // pred_fallthru
          _
        // Predicated region
        $region45: #{tpu_custom_call.1} parent=35 // pred_check
          %p880 = pneg %p155
        $region46: #{tpu_custom_call.1} parent=35 // pred_check_branch
          %882 = sbr.rel (%p880) target = $region48
        $region47: #{tpu_custom_call.1} parent=35 // pred_region
          _
        $region48: #{tpu_custom_call.1} parent=35 // pred_fallthru
          _
        // Predicated region
        $region49: #{tpu_custom_call.1} parent=35 // pred_check
          %p883 = pneg %p176
        $region50: #{tpu_custom_call.1} parent=35 // pred_check_branch
          %885 = sbr.rel (%p883) target = $region52
        $region51: #{tpu_custom_call.1} parent=35 // pred_region
          _
        $region52: #{tpu_custom_call.1} parent=35 // pred_fallthru
          _
        // Predicated region
        $region53: #{tpu_custom_call.1} parent=35 // pred_check
          %p886 = pneg %p197
        $region54: #{tpu_custom_call.1} parent=35 // pred_check_branch
          %888 = sbr.rel (%p886) target = $region56
        $region55: #{tpu_custom_call.1} parent=35 // pred_region
          _
        $region56: #{tpu_custom_call.1} parent=35 // pred_fallthru
          _
        // Predicated region
        $region57: #{tpu_custom_call.1} parent=35 // pred_check
          %p889 = pneg %p155
        $region58: #{tpu_custom_call.1} parent=35 // pred_check_branch
          %891 = sbr.rel (%p889) target = $region60
        $region59: #{tpu_custom_call.1} parent=35 // pred_region
          _
        $region60: #{tpu_custom_call.1} parent=35 // pred_fallthru
          _
        // Predicated region
        $region61: #{tpu_custom_call.1} parent=35 // pred_check
          %p892 = pneg %p176
        $region62: #{tpu_custom_call.1} parent=35 // pred_check_branch
          %894 = sbr.rel (%p892) target = $region64
        $region63: #{tpu_custom_call.1} parent=35 // pred_region
          _
        $region64: #{tpu_custom_call.1} parent=35 // pred_fallthru
          _
        // Predicated region
        $region65: #{tpu_custom_call.1} parent=35 // pred_check
          %p895 = pneg %p197
        $region66: #{tpu_custom_call.1} parent=35 // pred_check_branch
          %897 = sbr.rel (%p895) target = $region68
        $region67: #{tpu_custom_call.1} parent=35 // pred_region
          _
        $region68: #{tpu_custom_call.1} parent=35 // pred_fallthru
          _
      $region36: #{tpu_custom_call.1} parent=5 // pred_fallthru
        _
      %p898 = scmp.le.s32.totalorder 2, %s17
      // Predicated region
      $region69: #{tpu_custom_call.1} parent=5 // pred_check
        %p899 = pneg %p898
      $region70: #{tpu_custom_call.1} parent=5 // pred_check_branch
        %901 = sbr.rel (%p899) target = $region72
      $region71: #{tpu_custom_call.1} parent=5 // pred_region
        %s902 = ssub.s32 %s17, 2
        // Predicated region
        $region73: #{tpu_custom_call.1} parent=71 // pred_check
          %p903 = pneg %p140
        $region74: #{tpu_custom_call.1} parent=71 // pred_check_branch
          %905 = sbr.rel (%p903) target = $region76
        $region75: #{tpu_custom_call.1} parent=71 // pred_region
          %s906 = sand.u32 %s125, 1
          %s907 = scalar_lea.sflag [#allocation4], %s906
          %s908 = sand.u32 %s125, 1
          %s909 = smul.addr %s908, 32
          %s910 = scalar_lea.vmem [#allocation3], %s909
          %911 = dma.done %s907, 512
        $region76: #{tpu_custom_call.1} parent=71 // pred_fallthru
          _
      $region72: #{tpu_custom_call.1} parent=5 // pred_fallthru
        _
    $region6: #{tpu_custom_call.1} parent=1 // loop_footer
      %s21 = sadd.s32 1, %s17
    $region7: #{tpu_custom_call.1} parent=1 // loop_footer_branch
      %16 = sbr.rel target = $region3
    $region8: #{tpu_custom_call.1} parent=1 // loop_exit
      _
    %912 = vsyncpa [#allocation4], 1
    %s913 = scalar_lea.sflag [#allocation4], 1
    %914 = vsyncpa %s913, 1

</llo_original>
